<compile_context>
chip_gen: v6e
topology: v6e:2x2x1
jax: 0.10.0
libtpu: 0.0.40
codegen_flags: <defaults>
</compile_context>

<pallas_src>
import jax
import jax.numpy as jnp
from jax.experimental import pallas as pl
from jax.experimental.pallas import tpu as pltpu


# ---------------------------------------------------------------------------
# Kernel helpers (VPU broadcast FMAs; weights/biases are scalars in SMEM)
# ---------------------------------------------------------------------------

def _head_row(x, w_ref, b_ref, row, c_in):
    """One output-channel row: sum_ic w[row, ic] * x[ic, :] + b[row].

    Pure VPU scalar-broadcast multiply-adds; returns a (1, TILE_L) f32 array.
    """
    acc = w_ref[row, 0] * x[0:1, :]
    for ic in range(1, c_in):
        acc = acc + w_ref[row, ic] * x[ic:ic + 1, :]
    return acc + b_ref[row]


# ---------------------------------------------------------------------------
# Eval-mode fused kernels (head contraction + uncertainty transform)
# ---------------------------------------------------------------------------

def _gaussian_eval_kernel(x_ref, w_ref, b_ref, mean_ref, var_ref):
    c_in = x_ref.shape[0]
    c_out = mean_ref.shape[0]
    x = x_ref[...]                                   # (c_in, TILE_L), loaded once
    for oc in range(c_out):
        mean_ref[oc:oc + 1, :] = _head_row(x, w_ref, b_ref, oc, c_in)
        raw = _head_row(x, w_ref, b_ref, c_out + oc, c_in)
        var_ref[oc:oc + 1, :] = jnp.exp(raw)         # var = exp(var_raw)


def _laplacian_eval_kernel(x_ref, w_ref, b_ref, mean_ref, var_ref):
    c_in = x_ref.shape[0]
    c_out = mean_ref.shape[0]
    x = x_ref[...]
    for oc in range(c_out):
        mean_ref[oc:oc + 1, :] = _head_row(x, w_ref, b_ref, oc, c_in)
        raw = _head_row(x, w_ref, b_ref, c_out + oc, c_in)
        # 2 * exp(s)^2 == 2 * exp(2s)  (one EUP op, one fewer VPU mul)
        var_ref[oc:oc + 1, :] = 2.0 * jnp.exp(2.0 * raw)


def _tstudent_eval_kernel(x_ref, w_ref, b_ref, mean_ref, var_ref):
    c_in = x_ref.shape[0]
    c_out = mean_ref.shape[0]
    x = x_ref[...]
    for oc in range(c_out):
        mean_ref[oc:oc + 1, :] = _head_row(x, w_ref, b_ref, oc, c_in)
        t = jnp.exp(_head_row(x, w_ref, b_ref, c_out + oc, c_in))
        v = jnp.exp(_head_row(x, w_ref, b_ref, 2 * c_out + oc, c_in))
        # TODO(synk): like the PyTorch reference, no guard for exp(v) <= 2
        # (would give inf / negative variance).
        var_ref[oc:oc + 1, :] = v * t * t / (v - 2.0)


# ---------------------------------------------------------------------------
# Training-mode kernel: raw heads only (no transform, nothing discarded)
# ---------------------------------------------------------------------------

def _raw_heads_kernel(x_ref, w_ref, b_ref, *out_refs):
    c_in = x_ref.shape[0]
    c_out = out_refs[0].shape[0]
    x = x_ref[...]
    for h, o_ref in enumerate(out_refs):
        for oc in range(c_out):
            o_ref[oc:oc + 1, :] = _head_row(x, w_ref, b_ref, h * c_out + oc, c_in)


# ---------------------------------------------------------------------------
# pallas_call wrapper
# ---------------------------------------------------------------------------

def _pick_tile_l(length, cap=16384):
    """Biggest lane tile: full extent if it fits, else the largest multiple of
    128 that divides it (fallback: full extent)."""
    if length <= cap:
        return length
    best = 0
    t = 128
    while t <= cap:
        if length % t == 0:
            best = t
        t += 128
    return best if best > 0 else length


def _run_heads(kernel, x_nchw, w, b, n_outputs, c_out):
    """x_nchw: (N, Cin, H, W) f32.  w: (n_heads*c_out, c_in).  b: (n_heads*c_out,).

    Channels on sublanes, H*W on lanes -> lane-dense stores, no transposes.
    """
    n, c_in, h, wd = x_nchw.shape
    length = h * wd
    x3 = x_nchw.reshape(n, c_in, length)        # pure reshape (NCHW is contiguous)
    tile_l = _pick_tile_l(length)
    grid = (n, length // tile_l)

    x_spec = pl.BlockSpec((None, c_in, tile_l), lambda i, j: (i, 0, j))
    smem_spec = pl.BlockSpec(memory_space=pltpu.MemorySpace.SMEM)
    out_spec = pl.BlockSpec((None, c_out, tile_l), lambda i, j: (i, 0, j))

    out_shape = tuple(jax.ShapeDtypeStruct((n, c_out, length), jnp.float32)
                      for _ in range(n_outputs))

    fn = pl.pallas_call(
        kernel,
        out_shape=out_shape,
        grid_spec=pltpu.PrefetchScalarGridSpec(
            num_scalar_prefetch=0,
            grid=grid,
            in_specs=(x_spec, smem_spec, smem_spec),
            out_specs=tuple(out_spec for _ in range(n_outputs)),
        ),
        compiler_params=pltpu.CompilerParams(
            dimension_semantics=("parallel", "parallel")),
    )
    outs = fn(x3, w, b)
    if not isinstance(outs, (tuple, list)):
        outs = (outs,)
    return tuple(o.reshape(n, c_out, h, wd) for o in outs)


# ---------------------------------------------------------------------------
# Model wrapper (mirrors the PyTorch `Model` dispatch)
# ---------------------------------------------------------------------------

class Config:
    def __init__(self, is_train=False, num_gpu=1, uncertainty="aleatoric.gaussian",
                 n_samples=1, n_colors_in=4, n_colors_out=4):
        self.is_train = is_train
        self.num_gpu = num_gpu
        self.uncertainty = uncertainty
        self.n_samples = n_samples
        self.n_colors_in = n_colors_in
        self.n_colors_out = n_colors_out


class ModelPallas:
    """JAX/Pallas port of the PyTorch Model wrapper.

    The inner model is a synthetic pointwise conv with per-head weights
    (mean head + uncertainty head(s)); parameters are deterministic.
    """

    def __init__(self, config: Config):
        self.is_train = config.is_train
        # TODO(synk): torch data_parallel over num_gpu>1 / save / load have no
        # Pallas equivalent here (checkpoint IO and multi-device dispatch).
        self.num_gpu = config.num_gpu
        self.uncertainty = config.uncertainty
        self.n_samples = config.n_samples
        self.training = config.is_train

        c_in, c_out = config.n_colors_in, config.n_colors_out
        self.c_in, self.c_out = c_in, c_out

        key = jax.random.PRNGKey(42)
        ks = jax.random.split(key, 3)
        s = 1.0 / jnp.sqrt(jnp.float32(c_in))
        # mean head
        self.wm = jax.random.normal(ks[0], (c_out, c_in), jnp.float32) * s
        self.bm = jnp.zeros((c_out,), jnp.float32)
        # gaussian var / laplacian scale / tstudent t head (raw)
        self.w2 = jax.random.normal(ks[1], (c_out, c_in), jnp.float32) * s
        self.b2 = jnp.full((c_out,), -1.0, jnp.float32)
        # tstudent v head (bias > log(2) so that exp(v) - 2 > 0)
        self.w3 = jax.random.normal(ks[2], (c_out, c_in), jnp.float32) * s * 0.1
        self.b3 = jnp.full((c_out,), 1.5, jnp.float32)

        # Concatenated head parameters (single SMEM transfer per kernel).
        self.w1h = self.wm
        self.b1h = self.bm
        self.w2h = jnp.concatenate([self.wm, self.w2], axis=0)
        self.b2h = jnp.concatenate([self.bm, self.b2], axis=0)
        self.w3h = jnp.concatenate([self.wm, self.w2, self.w3], axis=0)
        self.b3h = jnp.concatenate([self.bm, self.b2, self.b3], axis=0)

    # ---- inner (synthetic) model forward: raw heads, no transform ----
    def _inner_forward(self, x_nchw):
        if self.uncertainty == "aleatoric.tstudent":
            mean, t_raw, v_raw = _run_heads(_raw_heads_kernel, x_nchw,
                                            self.w3h, self.b3h, 3, self.c_out)
            return {"mean": mean, "t": t_raw, "v": v_raw}
        elif self.uncertainty == "aleatoric.gaussian":
            mean, var_raw = _run_heads(_raw_heads_kernel, x_nchw,
                                       self.w2h, self.b2h, 2, self.c_out)
            return {"mean": mean, "var": var_raw}
        elif self.uncertainty == "aleatoric.laplacian":
            mean, scale_raw = _run_heads(_raw_heads_kernel, x_nchw,
                                         self.w2h, self.b2h, 2, self.c_out)
            return {"mean": mean, "scale": scale_raw}
        else:  # "normal" (synthetic inner model: mean head only)
            (mean,) = _run_heads(_raw_heads_kernel, x_nchw,
                                 self.w1h, self.b1h, 1, self.c_out)
            return {"mean": mean}

    # ---- public forward mirroring the PyTorch dispatch ----
    def forward(self, x_nchw):
        if self.training:
            return self._inner_forward(x_nchw)

        if self.uncertainty == "normal":
            return self._inner_forward(x_nchw)
        elif self.uncertainty == "aleatoric.gaussian":
            mean, var = _run_heads(_gaussian_eval_kernel, x_nchw,
                                   self.w2h, self.b2h, 2, self.c_out)
        elif self.uncertainty == "aleatoric.laplacian":
            mean, var = _run_heads(_laplacian_eval_kernel, x_nchw,
                                   self.w2h, self.b2h, 2, self.c_out)
        elif self.uncertainty == "aleatoric.tstudent":
            mean, var = _run_heads(_tstudent_eval_kernel, x_nchw,
                                   self.w3h, self.b3h, 2, self.c_out)
        else:
            raise Exception("Not implemented")

        return {"mean": mean, "var": var}

    __call__ = forward


# ---------------------------------------------------------------------------
# Reference (plain JAX) for sanity checking
# ---------------------------------------------------------------------------

def _ref_eval(model: ModelPallas, x_nchw, uncertainty):
    n, c, h, w = x_nchw.shape
    x3 = x_nchw.reshape(n, c, h * w)

    def head(wm, bm):
        return jnp.einsum("oi,nil->nol", wm, x3) + bm[None, :, None]

    mean = head(model.wm, model.bm)
    if uncertainty == "aleatoric.gaussian":
        var = jnp.exp(head(model.w2, model.b2))
    elif uncertainty == "aleatoric.laplacian":
        sc = jnp.exp(head(model.w2, model.b2))
        var = 2.0 * sc * sc
    elif uncertainty == "aleatoric.tstudent":
        t = jnp.exp(head(model.w2, model.b2))
        v = jnp.exp(head(model.w3, model.b3))
        var = v * t * t / (v - 2.0)
    else:
        raise ValueError(uncertainty)
    co = model.c_out
    return (mean.reshape(n, co, h, w), var.reshape(n, co, h, w))


# ---------------------------------------------------------------------------
# main
# ---------------------------------------------------------------------------

if __name__ == "__main__":
    key = jax.random.PRNGKey(0)
    N, C, H, W = 2, 4, 16, 16
    x = jax.random.normal(key, (N, C, H, W), jnp.float32)

    ok = True
    for unc in ["aleatoric.gaussian", "aleatoric.laplacian", "aleatoric.tstudent"]:
        cfg = Config(is_train=False, uncertainty=unc, n_colors_in=C, n_colors_out=C)
        model = ModelPallas(cfg)
        out = model(x)
        out = jax.block_until_ready(out)

        ref_mean, ref_var = _ref_eval(model, x, unc)
        if out["mean"].shape != (N, C, H, W) or out["var"].shape != (N, C, H, W):
            ok = False
            print(f"SHAPE MISMATCH for {unc}")
            continue
        if not (jnp.allclose(out["mean"], ref_mean, atol=1e-4, rtol=1e-4)
                and jnp.allclose(out["var"], ref_var, atol=1e-4, rtol=1e-4)):
            ok = False
            print(f"MISMATCH for {unc}")

    # Exercise the training path once (raw heads, no transform; not compared).
    cfg_tr = Config(is_train=True, uncertainty="aleatoric.tstudent",
                    n_colors_in=C, n_colors_out=C)
    model_tr = ModelPallas(cfg_tr)
    tr_out = jax.block_until_ready(model_tr(x))
    if set(tr_out.keys()) != {"mean", "t", "v"}:
        ok = False
        print("TRAIN PATH KEY MISMATCH")

    if ok:
        print("KERNEL_OK")
</pallas_src>

<mosaic_0001>
module attributes {stable_mosaic.version = 11 : i64} {
  func.func @_gaussian_eval_kernel(%arg0: i32, %arg1: i32, %arg2: memref<1x4x256xf32, #tpu.memory_space<vmem>>, %arg3: memref<8x4xf32, #tpu.memory_space<smem>>, %arg4: memref<8xf32, #tpu.memory_space<smem>>, %arg5: memref<1x4x256xf32, #tpu.memory_space<vmem>>, %arg6: memref<1x4x256xf32, #tpu.memory_space<vmem>>) attributes {dimension_semantics = [#tpu.dimension_semantics<parallel>, #tpu.dimension_semantics<parallel>], iteration_bounds = array<i64: 2, 1>, scalar_prefetch = 0 : i64, scratch_operands = 0 : i64, tpu.core_type = #tpu.core_type<tc>, window_params = [{transform_indices = @transform_0, window_bounds = array<i64: 1, 4, 256>}, {transform_indices = @transform_1, window_bounds = array<i64: 8, 4>}, {transform_indices = @transform_2, window_bounds = array<i64: 8>}, {transform_indices = @transform_3, window_bounds = array<i64: 1, 4, 256>}, {transform_indices = @transform_4, window_bounds = array<i64: 1, 4, 256>}]} {
    %c0 = arith.constant 0 : index
    %c0_0 = arith.constant 0 : index
    %c0_1 = arith.constant 0 : index
    %0 = vector.load %arg2[%c0, %c0_0, %c0_1] : memref<1x4x256xf32, #tpu.memory_space<vmem>>, vector<1x4x256xf32>
    %1 = vector.shape_cast %0 : vector<1x4x256xf32> to vector<4x256xf32>
    %c0_2 = arith.constant 0 : index
    %c0_3 = arith.constant 0 : index
    %2 = memref.load %arg3[%c0_2, %c0_3] : memref<8x4xf32, #tpu.memory_space<smem>>
    %3 = vector.extract_strided_slice %1 {offsets = [0, 0], sizes = [1, 256], strides = [1, 1]} : vector<4x256xf32> to vector<1x256xf32>
    %4 = vector.broadcast %2 : f32 to vector<1x256xf32>
    %5 = arith.mulf %4, %3 : vector<1x256xf32>
    %c0_4 = arith.constant 0 : index
    %c1 = arith.constant 1 : index
    %6 = memref.load %arg3[%c0_4, %c1] : memref<8x4xf32, #tpu.memory_space<smem>>
    %7 = vector.extract_strided_slice %1 {offsets = [1, 0], sizes = [1, 256], strides = [1, 1]} : vector<4x256xf32> to vector<1x256xf32>
    %8 = vector.broadcast %6 : f32 to vector<1x256xf32>
    %9 = arith.mulf %8, %7 : vector<1x256xf32>
    %10 = arith.addf %5, %9 : vector<1x256xf32>
    %c0_5 = arith.constant 0 : index
    %c2 = arith.constant 2 : index
    %11 = memref.load %arg3[%c0_5, %c2] : memref<8x4xf32, #tpu.memory_space<smem>>
    %12 = vector.extract_strided_slice %1 {offsets = [2, 0], sizes = [1, 256], strides = [1, 1]} : vector<4x256xf32> to vector<1x256xf32>
    %13 = vector.broadcast %11 : f32 to vector<1x256xf32>
    %14 = arith.mulf %13, %12 : vector<1x256xf32>
    %15 = arith.addf %10, %14 : vector<1x256xf32>
    %c0_6 = arith.constant 0 : index
    %c3 = arith.constant 3 : index
    %16 = memref.load %arg3[%c0_6, %c3] : memref<8x4xf32, #tpu.memory_space<smem>>
    %17 = vector.extract_strided_slice %1 {offsets = [3, 0], sizes = [1, 256], strides = [1, 1]} : vector<4x256xf32> to vector<1x256xf32>
    %18 = vector.broadcast %16 : f32 to vector<1x256xf32>
    %19 = arith.mulf %18, %17 : vector<1x256xf32>
    %20 = arith.addf %15, %19 : vector<1x256xf32>
    %c0_7 = arith.constant 0 : index
    %21 = memref.load %arg4[%c0_7] : memref<8xf32, #tpu.memory_space<smem>>
    %22 = vector.broadcast %21 : f32 to vector<1x256xf32>
    %23 = arith.addf %20, %22 : vector<1x256xf32>
    %c0_8 = arith.constant 0 : index
    %c0_9 = arith.constant 0 : index
    %c0_10 = arith.constant 0 : index
    %24 = vector.load %arg5[%c0_8, %c0_9, %c0_10] : memref<1x4x256xf32, #tpu.memory_space<vmem>>, vector<1x1x256xf32>
    %25 = vector.shape_cast %24 : vector<1x1x256xf32> to vector<1x256xf32>
    %26 = vector.shape_cast %23 : vector<1x256xf32> to vector<1x1x256xf32>
    tpu.vector_store %arg5[%c0_8, %c0_9, %c0_10], %26 {strides = array<i32>} : memref<1x4x256xf32, #tpu.memory_space<vmem>>, vector<1x1x256xf32>,
    %c4 = arith.constant 4 : index
    %c0_11 = arith.constant 0 : index
    %27 = memref.load %arg3[%c4, %c0_11] : memref<8x4xf32, #tpu.memory_space<smem>>
    %28 = vector.extract_strided_slice %1 {offsets = [0, 0], sizes = [1, 256], strides = [1, 1]} : vector<4x256xf32> to vector<1x256xf32>
    %29 = vector.broadcast %27 : f32 to vector<1x256xf32>
    %30 = arith.mulf %29, %28 : vector<1x256xf32>
    %c4_12 = arith.constant 4 : index
    %c1_13 = arith.constant 1 : index
    %31 = memref.load %arg3[%c4_12, %c1_13] : memref<8x4xf32, #tpu.memory_space<smem>>
    %32 = vector.extract_strided_slice %1 {offsets = [1, 0], sizes = [1, 256], strides = [1, 1]} : vector<4x256xf32> to vector<1x256xf32>
    %33 = vector.broadcast %31 : f32 to vector<1x256xf32>
    %34 = arith.mulf %33, %32 : vector<1x256xf32>
    %35 = arith.addf %30, %34 : vector<1x256xf32>
    %c4_14 = arith.constant 4 : index
    %c2_15 = arith.constant 2 : index
    %36 = memref.load %arg3[%c4_14, %c2_15] : memref<8x4xf32, #tpu.memory_space<smem>>
    %37 = vector.extract_strided_slice %1 {offsets = [2, 0], sizes = [1, 256], strides = [1, 1]} : vector<4x256xf32> to vector<1x256xf32>
    %38 = vector.broadcast %36 : f32 to vector<1x256xf32>
    %39 = arith.mulf %38, %37 : vector<1x256xf32>
    %40 = arith.addf %35, %39 : vector<1x256xf32>
    %c4_16 = arith.constant 4 : index
    %c3_17 = arith.constant 3 : index
    %41 = memref.load %arg3[%c4_16, %c3_17] : memref<8x4xf32, #tpu.memory_space<smem>>
    %42 = vector.extract_strided_slice %1 {offsets = [3, 0], sizes = [1, 256], strides = [1, 1]} : vector<4x256xf32> to vector<1x256xf32>
    %43 = vector.broadcast %41 : f32 to vector<1x256xf32>
    %44 = arith.mulf %43, %42 : vector<1x256xf32>
    %45 = arith.addf %40, %44 : vector<1x256xf32>
    %c4_18 = arith.constant 4 : index
    %46 = memref.load %arg4[%c4_18] : memref<8xf32, #tpu.memory_space<smem>>
    %47 = vector.broadcast %46 : f32 to vector<1x256xf32>
    %48 = arith.addf %45, %47 : vector<1x256xf32>
    %49 = math.exp %48 : vector<1x256xf32>
    %c0_19 = arith.constant 0 : index
    %c0_20 = arith.constant 0 : index
    %c0_21 = arith.constant 0 : index
    %50 = vector.load %arg6[%c0_19, %c0_20, %c0_21] : memref<1x4x256xf32, #tpu.memory_space<vmem>>, vector<1x1x256xf32>
    %51 = vector.shape_cast %50 : vector<1x1x256xf32> to vector<1x256xf32>
    %52 = vector.shape_cast %49 : vector<1x256xf32> to vector<1x1x256xf32>
    tpu.vector_store %arg6[%c0_19, %c0_20, %c0_21], %52 {strides = array<i32>} : memref<1x4x256xf32, #tpu.memory_space<vmem>>, vector<1x1x256xf32>,
    %c1_22 = arith.constant 1 : index
    %c0_23 = arith.constant 0 : index
    %53 = memref.load %arg3[%c1_22, %c0_23] : memref<8x4xf32, #tpu.memory_space<smem>>
    %54 = vector.extract_strided_slice %1 {offsets = [0, 0], sizes = [1, 256], strides = [1, 1]} : vector<4x256xf32> to vector<1x256xf32>
    %55 = vector.broadcast %53 : f32 to vector<1x256xf32>
    %56 = arith.mulf %55, %54 : vector<1x256xf32>
    %c1_24 = arith.constant 1 : index
    %c1_25 = arith.constant 1 : index
    %57 = memref.load %arg3[%c1_24, %c1_25] : memref<8x4xf32, #tpu.memory_space<smem>>
    %58 = vector.extract_strided_slice %1 {offsets = [1, 0], sizes = [1, 256], strides = [1, 1]} : vector<4x256xf32> to vector<1x256xf32>
    %59 = vector.broadcast %57 : f32 to vector<1x256xf32>
    %60 = arith.mulf %59, %58 : vector<1x256xf32>
    %61 = arith.addf %56, %60 : vector<1x256xf32>
    %c1_26 = arith.constant 1 : index
    %c2_27 = arith.constant 2 : index
    %62 = memref.load %arg3[%c1_26, %c2_27] : memref<8x4xf32, #tpu.memory_space<smem>>
    %63 = vector.extract_strided_slice %1 {offsets = [2, 0], sizes = [1, 256], strides = [1, 1]} : vector<4x256xf32> to vector<1x256xf32>
    %64 = vector.broadcast %62 : f32 to vector<1x256xf32>
    %65 = arith.mulf %64, %63 : vector<1x256xf32>
    %66 = arith.addf %61, %65 : vector<1x256xf32>
    %c1_28 = arith.constant 1 : index
    %c3_29 = arith.constant 3 : index
    %67 = memref.load %arg3[%c1_28, %c3_29] : memref<8x4xf32, #tpu.memory_space<smem>>
    %68 = vector.extract_strided_slice %1 {offsets = [3, 0], sizes = [1, 256], strides = [1, 1]} : vector<4x256xf32> to vector<1x256xf32>
    %69 = vector.broadcast %67 : f32 to vector<1x256xf32>
    %70 = arith.mulf %69, %68 : vector<1x256xf32>
    %71 = arith.addf %66, %70 : vector<1x256xf32>
    %c1_30 = arith.constant 1 : index
    %72 = memref.load %arg4[%c1_30] : memref<8xf32, #tpu.memory_space<smem>>
    %73 = vector.broadcast %72 : f32 to vector<1x256xf32>
    %74 = arith.addf %71, %73 : vector<1x256xf32>
    %c0_31 = arith.constant 0 : index
    %c1_32 = arith.constant 1 : index
    %c0_33 = arith.constant 0 : index
    %75 = vector.load %arg5[%c0_31, %c1_32, %c0_33] : memref<1x4x256xf32, #tpu.memory_space<vmem>>, vector<1x1x256xf32>
    %76 = vector.shape_cast %75 : vector<1x1x256xf32> to vector<1x256xf32>
    %77 = vector.shape_cast %74 : vector<1x256xf32> to vector<1x1x256xf32>
    tpu.vector_store %arg5[%c0_31, %c1_32, %c0_33], %77 {strides = array<i32>} : memref<1x4x256xf32, #tpu.memory_space<vmem>>, vector<1x1x256xf32>,
    %c5 = arith.constant 5 : index
    %c0_34 = arith.constant 0 : index
    %78 = memref.load %arg3[%c5, %c0_34] : memref<8x4xf32, #tpu.memory_space<smem>>
    %79 = vector.extract_strided_slice %1 {offsets = [0, 0], sizes = [1, 256], strides = [1, 1]} : vector<4x256xf32> to vector<1x256xf32>
    %80 = vector.broadcast %78 : f32 to vector<1x256xf32>
    %81 = arith.mulf %80, %79 : vector<1x256xf32>
    %c5_35 = arith.constant 5 : index
    %c1_36 = arith.constant 1 : index
    %82 = memref.load %arg3[%c5_35, %c1_36] : memref<8x4xf32, #tpu.memory_space<smem>>
    %83 = vector.extract_strided_slice %1 {offsets = [1, 0], sizes = [1, 256], strides = [1, 1]} : vector<4x256xf32> to vector<1x256xf32>
    %84 = vector.broadcast %82 : f32 to vector<1x256xf32>
    %85 = arith.mulf %84, %83 : vector<1x256xf32>
    %86 = arith.addf %81, %85 : vector<1x256xf32>
    %c5_37 = arith.constant 5 : index
    %c2_38 = arith.constant 2 : index
    %87 = memref.load %arg3[%c5_37, %c2_38] : memref<8x4xf32, #tpu.memory_space<smem>>
    %88 = vector.extract_strided_slice %1 {offsets = [2, 0], sizes = [1, 256], strides = [1, 1]} : vector<4x256xf32> to vector<1x256xf32>
    %89 = vector.broadcast %87 : f32 to vector<1x256xf32>
    %90 = arith.mulf %89, %88 : vector<1x256xf32>
    %91 = arith.addf %86, %90 : vector<1x256xf32>
    %c5_39 = arith.constant 5 : index
    %c3_40 = arith.constant 3 : index
    %92 = memref.load %arg3[%c5_39, %c3_40] : memref<8x4xf32, #tpu.memory_space<smem>>
    %93 = vector.extract_strided_slice %1 {offsets = [3, 0], sizes = [1, 256], strides = [1, 1]} : vector<4x256xf32> to vector<1x256xf32>
    %94 = vector.broadcast %92 : f32 to vector<1x256xf32>
    %95 = arith.mulf %94, %93 : vector<1x256xf32>
    %96 = arith.addf %91, %95 : vector<1x256xf32>
    %c5_41 = arith.constant 5 : index
    %97 = memref.load %arg4[%c5_41] : memref<8xf32, #tpu.memory_space<smem>>
    %98 = vector.broadcast %97 : f32 to vector<1x256xf32>
    %99 = arith.addf %96, %98 : vector<1x256xf32>
    %100 = math.exp %99 : vector<1x256xf32>
    %c0_42 = arith.constant 0 : index
    %c1_43 = arith.constant 1 : index
    %c0_44 = arith.constant 0 : index
    %101 = vector.load %arg6[%c0_42, %c1_43, %c0_44] : memref<1x4x256xf32, #tpu.memory_space<vmem>>, vector<1x1x256xf32>
    %102 = vector.shape_cast %101 : vector<1x1x256xf32> to vector<1x256xf32>
    %103 = vector.shape_cast %100 : vector<1x256xf32> to vector<1x1x256xf32>
    tpu.vector_store %arg6[%c0_42, %c1_43, %c0_44], %103 {strides = array<i32>} : memref<1x4x256xf32, #tpu.memory_space<vmem>>, vector<1x1x256xf32>,
    %c2_45 = arith.constant 2 : index
    %c0_46 = arith.constant 0 : index
    %104 = memref.load %arg3[%c2_45, %c0_46] : memref<8x4xf32, #tpu.memory_space<smem>>
    %105 = vector.extract_strided_slice %1 {offsets = [0, 0], sizes = [1, 256], strides = [1, 1]} : vector<4x256xf32> to vector<1x256xf32>
    %106 = vector.broadcast %104 : f32 to vector<1x256xf32>
    %107 = arith.mulf %106, %105 : vector<1x256xf32>
    %c2_47 = arith.constant 2 : index
    %c1_48 = arith.constant 1 : index
    %108 = memref.load %arg3[%c2_47, %c1_48] : memref<8x4xf32, #tpu.memory_space<smem>>
    %109 = vector.extract_strided_slice %1 {offsets = [1, 0], sizes = [1, 256], strides = [1, 1]} : vector<4x256xf32> to vector<1x256xf32>
    %110 = vector.broadcast %108 : f32 to vector<1x256xf32>
    %111 = arith.mulf %110, %109 : vector<1x256xf32>
    %112 = arith.addf %107, %111 : vector<1x256xf32>
    %c2_49 = arith.constant 2 : index
    %c2_50 = arith.constant 2 : index
    %113 = memref.load %arg3[%c2_49, %c2_50] : memref<8x4xf32, #tpu.memory_space<smem>>
    %114 = vector.extract_strided_slice %1 {offsets = [2, 0], sizes = [1, 256], strides = [1, 1]} : vector<4x256xf32> to vector<1x256xf32>
    %115 = vector.broadcast %113 : f32 to vector<1x256xf32>
    %116 = arith.mulf %115, %114 : vector<1x256xf32>
    %117 = arith.addf %112, %116 : vector<1x256xf32>
    %c2_51 = arith.constant 2 : index
    %c3_52 = arith.constant 3 : index
    %118 = memref.load %arg3[%c2_51, %c3_52] : memref<8x4xf32, #tpu.memory_space<smem>>
    %119 = vector.extract_strided_slice %1 {offsets = [3, 0], sizes = [1, 256], strides = [1, 1]} : vector<4x256xf32> to vector<1x256xf32>
    %120 = vector.broadcast %118 : f32 to vector<1x256xf32>
    %121 = arith.mulf %120, %119 : vector<1x256xf32>
    %122 = arith.addf %117, %121 : vector<1x256xf32>
    %c2_53 = arith.constant 2 : index
    %123 = memref.load %arg4[%c2_53] : memref<8xf32, #tpu.memory_space<smem>>
    %124 = vector.broadcast %123 : f32 to vector<1x256xf32>
    %125 = arith.addf %122, %124 : vector<1x256xf32>
    %c0_54 = arith.constant 0 : index
    %c2_55 = arith.constant 2 : index
    %c0_56 = arith.constant 0 : index
    %126 = vector.load %arg5[%c0_54, %c2_55, %c0_56] : memref<1x4x256xf32, #tpu.memory_space<vmem>>, vector<1x1x256xf32>
    %127 = vector.shape_cast %126 : vector<1x1x256xf32> to vector<1x256xf32>
    %128 = vector.shape_cast %125 : vector<1x256xf32> to vector<1x1x256xf32>
    tpu.vector_store %arg5[%c0_54, %c2_55, %c0_56], %128 {strides = array<i32>} : memref<1x4x256xf32, #tpu.memory_space<vmem>>, vector<1x1x256xf32>,
    %c6 = arith.constant 6 : index
    %c0_57 = arith.constant 0 : index
    %129 = memref.load %arg3[%c6, %c0_57] : memref<8x4xf32, #tpu.memory_space<smem>>
    %130 = vector.extract_strided_slice %1 {offsets = [0, 0], sizes = [1, 256], strides = [1, 1]} : vector<4x256xf32> to vector<1x256xf32>
    %131 = vector.broadcast %129 : f32 to vector<1x256xf32>
    %132 = arith.mulf %131, %130 : vector<1x256xf32>
    %c6_58 = arith.constant 6 : index
    %c1_59 = arith.constant 1 : index
    %133 = memref.load %arg3[%c6_58, %c1_59] : memref<8x4xf32, #tpu.memory_space<smem>>
    %134 = vector.extract_strided_slice %1 {offsets = [1, 0], sizes = [1, 256], strides = [1, 1]} : vector<4x256xf32> to vector<1x256xf32>
    %135 = vector.broadcast %133 : f32 to vector<1x256xf32>
    %136 = arith.mulf %135, %134 : vector<1x256xf32>
    %137 = arith.addf %132, %136 : vector<1x256xf32>
    %c6_60 = arith.constant 6 : index
    %c2_61 = arith.constant 2 : index
    %138 = memref.load %arg3[%c6_60, %c2_61] : memref<8x4xf32, #tpu.memory_space<smem>>
    %139 = vector.extract_strided_slice %1 {offsets = [2, 0], sizes = [1, 256], strides = [1, 1]} : vector<4x256xf32> to vector<1x256xf32>
    %140 = vector.broadcast %138 : f32 to vector<1x256xf32>
    %141 = arith.mulf %140, %139 : vector<1x256xf32>
    %142 = arith.addf %137, %141 : vector<1x256xf32>
    %c6_62 = arith.constant 6 : index
    %c3_63 = arith.constant 3 : index
    %143 = memref.load %arg3[%c6_62, %c3_63] : memref<8x4xf32, #tpu.memory_space<smem>>
    %144 = vector.extract_strided_slice %1 {offsets = [3, 0], sizes = [1, 256], strides = [1, 1]} : vector<4x256xf32> to vector<1x256xf32>
    %145 = vector.broadcast %143 : f32 to vector<1x256xf32>
    %146 = arith.mulf %145, %144 : vector<1x256xf32>
    %147 = arith.addf %142, %146 : vector<1x256xf32>
    %c6_64 = arith.constant 6 : index
    %148 = memref.load %arg4[%c6_64] : memref<8xf32, #tpu.memory_space<smem>>
    %149 = vector.broadcast %148 : f32 to vector<1x256xf32>
    %150 = arith.addf %147, %149 : vector<1x256xf32>
    %151 = math.exp %150 : vector<1x256xf32>
    %c0_65 = arith.constant 0 : index
    %c2_66 = arith.constant 2 : index
    %c0_67 = arith.constant 0 : index
    %152 = vector.load %arg6[%c0_65, %c2_66, %c0_67] : memref<1x4x256xf32, #tpu.memory_space<vmem>>, vector<1x1x256xf32>
    %153 = vector.shape_cast %152 : vector<1x1x256xf32> to vector<1x256xf32>
    %154 = vector.shape_cast %151 : vector<1x256xf32> to vector<1x1x256xf32>
    tpu.vector_store %arg6[%c0_65, %c2_66, %c0_67], %154 {strides = array<i32>} : memref<1x4x256xf32, #tpu.memory_space<vmem>>, vector<1x1x256xf32>,
    %c3_68 = arith.constant 3 : index
    %c0_69 = arith.constant 0 : index
    %155 = memref.load %arg3[%c3_68, %c0_69] : memref<8x4xf32, #tpu.memory_space<smem>>
    %156 = vector.extract_strided_slice %1 {offsets = [0, 0], sizes = [1, 256], strides = [1, 1]} : vector<4x256xf32> to vector<1x256xf32>
    %157 = vector.broadcast %155 : f32 to vector<1x256xf32>
    %158 = arith.mulf %157, %156 : vector<1x256xf32>
    %c3_70 = arith.constant 3 : index
    %c1_71 = arith.constant 1 : index
    %159 = memref.load %arg3[%c3_70, %c1_71] : memref<8x4xf32, #tpu.memory_space<smem>>
    %160 = vector.extract_strided_slice %1 {offsets = [1, 0], sizes = [1, 256], strides = [1, 1]} : vector<4x256xf32> to vector<1x256xf32>
    %161 = vector.broadcast %159 : f32 to vector<1x256xf32>
    %162 = arith.mulf %161, %160 : vector<1x256xf32>
    %163 = arith.addf %158, %162 : vector<1x256xf32>
    %c3_72 = arith.constant 3 : index
    %c2_73 = arith.constant 2 : index
    %164 = memref.load %arg3[%c3_72, %c2_73] : memref<8x4xf32, #tpu.memory_space<smem>>
    %165 = vector.extract_strided_slice %1 {offsets = [2, 0], sizes = [1, 256], strides = [1, 1]} : vector<4x256xf32> to vector<1x256xf32>
    %166 = vector.broadcast %164 : f32 to vector<1x256xf32>
    %167 = arith.mulf %166, %165 : vector<1x256xf32>
    %168 = arith.addf %163, %167 : vector<1x256xf32>
    %c3_74 = arith.constant 3 : index
    %c3_75 = arith.constant 3 : index
    %169 = memref.load %arg3[%c3_74, %c3_75] : memref<8x4xf32, #tpu.memory_space<smem>>
    %170 = vector.extract_strided_slice %1 {offsets = [3, 0], sizes = [1, 256], strides = [1, 1]} : vector<4x256xf32> to vector<1x256xf32>
    %171 = vector.broadcast %169 : f32 to vector<1x256xf32>
    %172 = arith.mulf %171, %170 : vector<1x256xf32>
    %173 = arith.addf %168, %172 : vector<1x256xf32>
    %c3_76 = arith.constant 3 : index
    %174 = memref.load %arg4[%c3_76] : memref<8xf32, #tpu.memory_space<smem>>
    %175 = vector.broadcast %174 : f32 to vector<1x256xf32>
    %176 = arith.addf %173, %175 : vector<1x256xf32>
    %c0_77 = arith.constant 0 : index
    %c3_78 = arith.constant 3 : index
    %c0_79 = arith.constant 0 : index
    %177 = vector.load %arg5[%c0_77, %c3_78, %c0_79] : memref<1x4x256xf32, #tpu.memory_space<vmem>>, vector<1x1x256xf32>
    %178 = vector.shape_cast %177 : vector<1x1x256xf32> to vector<1x256xf32>
    %179 = vector.shape_cast %176 : vector<1x256xf32> to vector<1x1x256xf32>
    tpu.vector_store %arg5[%c0_77, %c3_78, %c0_79], %179 {strides = array<i32>} : memref<1x4x256xf32, #tpu.memory_space<vmem>>, vector<1x1x256xf32>,
    %c7 = arith.constant 7 : index
    %c0_80 = arith.constant 0 : index
    %180 = memref.load %arg3[%c7, %c0_80] : memref<8x4xf32, #tpu.memory_space<smem>>
    %181 = vector.extract_strided_slice %1 {offsets = [0, 0], sizes = [1, 256], strides = [1, 1]} : vector<4x256xf32> to vector<1x256xf32>
    %182 = vector.broadcast %180 : f32 to vector<1x256xf32>
    %183 = arith.mulf %182, %181 : vector<1x256xf32>
    %c7_81 = arith.constant 7 : index
    %c1_82 = arith.constant 1 : index
    %184 = memref.load %arg3[%c7_81, %c1_82] : memref<8x4xf32, #tpu.memory_space<smem>>
    %185 = vector.extract_strided_slice %1 {offsets = [1, 0], sizes = [1, 256], strides = [1, 1]} : vector<4x256xf32> to vector<1x256xf32>
    %186 = vector.broadcast %184 : f32 to vector<1x256xf32>
    %187 = arith.mulf %186, %185 : vector<1x256xf32>
    %188 = arith.addf %183, %187 : vector<1x256xf32>
    %c7_83 = arith.constant 7 : index
    %c2_84 = arith.constant 2 : index
    %189 = memref.load %arg3[%c7_83, %c2_84] : memref<8x4xf32, #tpu.memory_space<smem>>
    %190 = vector.extract_strided_slice %1 {offsets = [2, 0], sizes = [1, 256], strides = [1, 1]} : vector<4x256xf32> to vector<1x256xf32>
    %191 = vector.broadcast %189 : f32 to vector<1x256xf32>
    %192 = arith.mulf %191, %190 : vector<1x256xf32>
    %193 = arith.addf %188, %192 : vector<1x256xf32>
    %c7_85 = arith.constant 7 : index
    %c3_86 = arith.constant 3 : index
    %194 = memref.load %arg3[%c7_85, %c3_86] : memref<8x4xf32, #tpu.memory_space<smem>>
    %195 = vector.extract_strided_slice %1 {offsets = [3, 0], sizes = [1, 256], strides = [1, 1]} : vector<4x256xf32> to vector<1x256xf32>
    %196 = vector.broadcast %194 : f32 to vector<1x256xf32>
    %197 = arith.mulf %196, %195 : vector<1x256xf32>
    %198 = arith.addf %193, %197 : vector<1x256xf32>
    %c7_87 = arith.constant 7 : index
    %199 = memref.load %arg4[%c7_87] : memref<8xf32, #tpu.memory_space<smem>>
    %200 = vector.broadcast %199 : f32 to vector<1x256xf32>
    %201 = arith.addf %198, %200 : vector<1x256xf32>
    %202 = math.exp %201 : vector<1x256xf32>
    %c0_88 = arith.constant 0 : index
    %c3_89 = arith.constant 3 : index
    %c0_90 = arith.constant 0 : index
    %203 = vector.load %arg6[%c0_88, %c3_89, %c0_90] : memref<1x4x256xf32, #tpu.memory_space<vmem>>, vector<1x1x256xf32>
    %204 = vector.shape_cast %203 : vector<1x1x256xf32> to vector<1x256xf32>
    %205 = vector.shape_cast %202 : vector<1x256xf32> to vector<1x1x256xf32>
    tpu.vector_store %arg6[%c0_88, %c3_89, %c0_90], %205 {strides = array<i32>} : memref<1x4x256xf32, #tpu.memory_space<vmem>>, vector<1x1x256xf32>,
    return
  }
  func.func @transform_0(%arg0: i32, %arg1: i32) -> (i32, i32, i32) {
    %c0_i32 = arith.constant 0 : i32
    %c0_i32_0 = arith.constant 0 : i32
    return %arg0, %c0_i32, %arg1 : i32, i32, i32
  }
  func.func @transform_1(%arg0: i32, %arg1: i32) -> (i32, i32) {
    %c0_i32 = arith.constant 0 : i32
    %c0_i32_0 = arith.constant 0 : i32
    %c0_i32_1 = arith.constant 0 : i32
    return %c0_i32, %c0_i32_0 : i32, i32
  }
  func.func @transform_2(%arg0: i32, %arg1: i32) -> i32 {
    %c0_i32 = arith.constant 0 : i32
    %c0_i32_0 = arith.constant 0 : i32
    return %c0_i32 : i32
  }
  func.func @transform_3(%arg0: i32, %arg1: i32) -> (i32, i32, i32) {
    %c0_i32 = arith.constant 0 : i32
    %c0_i32_0 = arith.constant 0 : i32
    return %arg0, %c0_i32, %arg1 : i32, i32, i32
  }
  func.func @transform_4(%arg0: i32, %arg1: i32) -> (i32, i32, i32) {
    %c0_i32 = arith.constant 0 : i32
    %c0_i32_0 = arith.constant 0 : i32
    return %arg0, %c0_i32, %arg1 : i32, i32, i32
  }
}

</mosaic_0001>

<llo_original>
// kernel: tpu_custom_call.1
$region0: #{tpu_custom_call.1}
  #allocation0 [shape = 'u32[]', space=smem, size = 0x4, offset = 0x4, fixed_abs, tag = 'smem constant byte address 0x4 - core index']
  #allocation1 [shape = 'u32[144,128]{1,0:T(1,128)}', space=vmem, size = 0x12000, scoped, tag = 'internal scratch']
  %s0 = inlined_call_operand.hbm [shape: f32[2,4,256], index: 0, kind: input, shape index: {}]
  %s1 = inlined_call_operand.vmem [shape: f32[8,4], index: 1, kind: input, shape index: {}]
  %s2 = inlined_call_operand.vmem [shape: f32[8], index: 2, kind: input, shape index: {}]
  %s3 = inlined_call_operand.hbm [shape: f32[2,4,256], index: 3, kind: output, shape index: {0}]
  %s4 = inlined_call_operand.hbm [shape: f32[2,4,256], index: 4, kind: output, shape index: {1}]
  %5 = xla_tuple %s3, %s4
  %s6 = sld [smem:[#allocation0]]
  $region65: #{tpu_custom_call.1} parent=0
    _
  %s8 = ssub.s32 1, %s6
  %s9 = scalar_select 0, %s8, %s6
  $region1: #{tpu_custom_call.1} parent=0
    #allocation2 [shape = 'u8[8192]{0}', space=vmem, size = 0x2000, scoped, tag = 'input window, operand 0']
    #allocation3 [shape = 's32[2]{0}', space=sflag, size = 0x8, scoped, tag = 'scoped memory for tpu_custom_call.1']
    #allocation4 [shape = 's32[2]{0}', space=sflag, size = 0x8, scoped, tag = 'scoped memory for tpu_custom_call.1']
    #allocation5 [shape = 's32[2]{0}', space=sflag, size = 0x8, scoped, tag = 'scoped memory for tpu_custom_call.1']
    #allocation6 [shape = 'u8[4096]{0}', space=smem, size = 0x1000, scoped, tag = 'input window, operand 1, single buffered']
    #allocation7 [shape = 'u8[512]{0}', space=smem, size = 0x200, scoped, tag = 'input window, operand 2, single buffered']
    #allocation8 [shape = 's32[1]{0}', space=sflag, size = 0x4, scoped, tag = 'scoped memory for tpu_custom_call.1']
    #allocation9 [shape = 'u8[8192]{0}', space=vmem, size = 0x2000, scoped, tag = 'output window, operand 0']
    #allocation10 [shape = 'u8[8192]{0}', space=vmem, size = 0x2000, scoped, tag = 'output window, operand 1']
    #allocation11 [shape = 's32[2]{0}', space=sflag, size = 0x8, scoped, tag = 'scoped memory for tpu_custom_call.1']
    %10 = vsyncpa [#allocation3], 0
    %s11 = scalar_lea.sflag [#allocation3], 1
    %12 = vsyncpa %s11, 0
    %13 = vsyncpa [#allocation5], 0
    %14 = vsyncpa [#allocation8], 0
    %15 = vsyncpa [#allocation4], 0
    %s16 = scalar_lea.sflag [#allocation4], 1
    %17 = vsyncpa %s16, 0
    %18 = vsyncpa [#allocation11], 0
    %s19 = scalar_lea.sflag [#allocation11], 1
    %20 = vsyncpa %s19, 0
    loop: start=0, step=1, limit=4
    $region2: #{tpu_custom_call.1} parent=1 // loop_pre_header
      _
    $region3: #{tpu_custom_call.1} parent=1 // loop_header
      %s22 = sphi 0, %s26
      %p23 = scmp.ge.s32.totalorder %s22, 4
      %s29 = sphi 0, %s41
      %s30 = sphi 0, %s37
      %s31 = sphi 0, %s29
      %s32 = sphi 0, %s30
      %s33 = sphi 0, %s31
      %s34 = sphi 0, %s32
      %s46 = sphi 0, %s48
      %s49 = sphi 0, %s46
      %s50 = sphi 0, %s49
      %s66 = sphi 0, %s50
      %s70 = sphi 0, %s70
      %s72 = sphi 0, %s70
      %s73 = sphi 0, %s72
      %s87 = sphi 0, %s73
      %s91 = sphi 0, %s91
      %s93 = sphi 0, %s91
      %s94 = sphi 0, %s93
      %s108 = sphi 0, %s94
      %s116 = sphi 0, %s118
      %s119 = sphi 0, %s116
      %s120 = sphi 0, %s119
      %s136 = sphi 0, %s120
      %s144 = sphi 0, %s146
      %s147 = sphi 0, %s144
      %s148 = sphi 0, %s147
      %s164 = sphi 0, %s148
    $region4: #{tpu_custom_call.1} parent=1 // loop_header_branch
      %25 = sbr.rel (%p23) target = $region8
    $region5: #{tpu_custom_call.1} parent=1 // loop_body
      %s27 = ssub.s32 %s22, 1
      %s28 = ssub.s32 %s22, 2
      %s35 = sadd.s32 1, %s30
      %p36 = scmp.ge.s32.totalorder %s35, 1
      %s37 = scalar_select %p36, 0, %s35
      %s38 = sadd.s32 1, %s29
      %s39 = scalar_select %p36, %s38, %s29
      %p40 = scmp.ge.s32.totalorder %s39, 2
      %s41 = scalar_select %p40, 0, %s39
      %s42 = ssub.s32 %s29, %s41
      %s43 = ssub.s32 %s30, %s37
      %s44 = sor.u32 %s42, %s43
      %p45 = scmp.eq.s32.totalorder %s44, 0
      %s47 = sadd.s32 %s46, 1
      %s48 = scalar_select %p45, %s46, %s47
      %p51 = pneg %p45
      %p52 = scmp.eq.s32.totalorder %s22, 1
      %p53 = por %p51, %p52
      %p54 = scmp.ne.s32.totalorder %s46, %s49
      %p55 = scmp.eq.s32.totalorder %s22, 0
      %p56 = por %p54, %p55
      %p57 = scmp.ne.s32.totalorder %s46, %s49
      %p58 = scmp.eq.s32.totalorder %s27, 1
      %p59 = por %p57, %p58
      %p60 = scmp.ne.s32.totalorder %s49, %s50
      %p61 = scmp.eq.s32.totalorder %s27, 0
      %p62 = por %p60, %p61
      %p63 = scmp.ne.s32.totalorder %s49, %s50
      %p64 = scmp.eq.s32.totalorder %s28, 1
      %p65 = por %p63, %p64
      %p67 = scmp.ne.s32.totalorder %s50, %s66
      %p68 = scmp.eq.s32.totalorder %s28, 0
      %p69 = por %p67, %p68
      %s71 = sadd.s32 %s70, 1
      %p74 = scmp.eq.s32.totalorder %s22, 1
      %p75 = scmp.ne.s32.totalorder %s70, %s72
      %p76 = scmp.eq.s32.totalorder %s22, 0
      %p77 = por %p75, %p76
      %p78 = scmp.ne.s32.totalorder %s70, %s72
      %p79 = scmp.eq.s32.totalorder %s27, 1
      %p80 = por %p78, %p79
      %p81 = scmp.ne.s32.totalorder %s72, %s73
      %p82 = scmp.eq.s32.totalorder %s27, 0
      %p83 = por %p81, %p82
      %p84 = scmp.ne.s32.totalorder %s72, %s73
      %p85 = scmp.eq.s32.totalorder %s28, 1
      %p86 = por %p84, %p85
      %p88 = scmp.ne.s32.totalorder %s73, %s87
      %p89 = scmp.eq.s32.totalorder %s28, 0
      %p90 = por %p88, %p89
      %s92 = sadd.s32 %s91, 1
      %p95 = scmp.eq.s32.totalorder %s22, 1
      %p96 = scmp.ne.s32.totalorder %s91, %s93
      %p97 = scmp.eq.s32.totalorder %s22, 0
      %p98 = por %p96, %p97
      %p99 = scmp.ne.s32.totalorder %s91, %s93
      %p100 = scmp.eq.s32.totalorder %s27, 1
      %p101 = por %p99, %p100
      %p102 = scmp.ne.s32.totalorder %s93, %s94
      %p103 = scmp.eq.s32.totalorder %s27, 0
      %p104 = por %p102, %p103
      %p105 = scmp.ne.s32.totalorder %s93, %s94
      %p106 = scmp.eq.s32.totalorder %s28, 1
      %p107 = por %p105, %p106
      %p109 = scmp.ne.s32.totalorder %s94, %s108
      %p110 = scmp.eq.s32.totalorder %s28, 0
      %p111 = por %p109, %p110
      %s112 = ssub.s32 %s29, %s41
      %s113 = ssub.s32 %s30, %s37
      %s114 = sor.u32 %s112, %s113
      %p115 = scmp.eq.s32.totalorder %s114, 0
      %s117 = sadd.s32 %s116, 1
      %s118 = scalar_select %p115, %s116, %s117
      %p121 = pneg %p115
      %p122 = scmp.eq.s32.totalorder %s22, 1
      %p123 = por %p121, %p122
      %p124 = scmp.ne.s32.totalorder %s116, %s119
      %p125 = scmp.eq.s32.totalorder %s22, 0
      %p126 = por %p124, %p125
      %p127 = scmp.ne.s32.totalorder %s116, %s119
      %p128 = scmp.eq.s32.totalorder %s27, 1
      %p129 = por %p127, %p128
      %p130 = scmp.ne.s32.totalorder %s119, %s120
      %p131 = scmp.eq.s32.totalorder %s27, 0
      %p132 = por %p130, %p131
      %p133 = scmp.ne.s32.totalorder %s119, %s120
      %p134 = scmp.eq.s32.totalorder %s28, 1
      %p135 = por %p133, %p134
      %p137 = scmp.ne.s32.totalorder %s120, %s136
      %p138 = scmp.eq.s32.totalorder %s28, 0
      %p139 = por %p137, %p138
      %s140 = ssub.s32 %s29, %s41
      %s141 = ssub.s32 %s30, %s37
      %s142 = sor.u32 %s140, %s141
      %p143 = scmp.eq.s32.totalorder %s142, 0
      %s145 = sadd.s32 %s144, 1
      %s146 = scalar_select %p143, %s144, %s145
      %p149 = pneg %p143
      %p150 = scmp.eq.s32.totalorder %s22, 1
      %p151 = por %p149, %p150
      %p152 = scmp.ne.s32.totalorder %s144, %s147
      %p153 = scmp.eq.s32.totalorder %s22, 0
      %p154 = por %p152, %p153
      %p155 = scmp.ne.s32.totalorder %s144, %s147
      %p156 = scmp.eq.s32.totalorder %s27, 1
      %p157 = por %p155, %p156
      %p158 = scmp.ne.s32.totalorder %s147, %s148
      %p159 = scmp.eq.s32.totalorder %s27, 0
      %p160 = por %p158, %p159
      %p161 = scmp.ne.s32.totalorder %s147, %s148
      %p162 = scmp.eq.s32.totalorder %s28, 1
      %p163 = por %p161, %p162
      %p165 = scmp.ne.s32.totalorder %s148, %s164
      %p166 = scmp.eq.s32.totalorder %s28, 0
      %p167 = por %p165, %p166
      %p168 = scmp.le.s32.totalorder 1, %s22
      %p169 = scmp.lt.s32.totalorder %s22, 3
      %p170 = pnand %p168, %p169
      %p171 = pneg %p170
      // Predicated region
      $region9: #{tpu_custom_call.1} parent=5 // pred_check
        _
      $region10: #{tpu_custom_call.1} parent=5 // pred_check_branch
        %173 = sbr.rel (%p170) target = $region12
      $region11: #{tpu_custom_call.1} parent=5 // pred_region
        %s174 = ssub.s32 %s22, 1
        // Predicated region
        $region13: #{tpu_custom_call.1} parent=11 // pred_check
          %p175 = pneg %p83
        $region14: #{tpu_custom_call.1} parent=11 // pred_check_branch
          %177 = sbr.rel (%p175) target = $region16
        $region15: #{tpu_custom_call.1} parent=11 // pred_region
          %s179 = ssub.s32 128, 128
          %180 = vsyncadd [#allocation5], %s179
          %s182 = sshll.u32 %s1, 4
          %s183 = int_to_ptr.vmem [resolvable:$true] %s182
          %185 = dma.vmem_to_smem %s183, 128, [#allocation6], [#allocation5]
        $region16: #{tpu_custom_call.1} parent=11 // pred_fallthru
          _
        // Predicated region
        $region17: #{tpu_custom_call.1} parent=11 // pred_check
          %p186 = pneg %p104
        $region18: #{tpu_custom_call.1} parent=11 // pred_check_branch
          %188 = sbr.rel (%p186) target = $region20
        $region19: #{tpu_custom_call.1} parent=11 // pred_region
          %s190 = ssub.s32 16, 16
          %191 = vsyncadd [#allocation8], %s190
          %s193 = sshll.u32 %s2, 4
          %s194 = int_to_ptr.vmem [resolvable:$true] %s193
          %196 = dma.vmem_to_smem %s194, 16, [#allocation7], [#allocation8]
        $region20: #{tpu_custom_call.1} parent=11 // pred_fallthru
          _
      $region12: #{tpu_custom_call.1} parent=5 // pred_fallthru
        _
      %p197 = scmp.lt.s32.totalorder %s22, 2
      // Predicated region
      $region21: #{tpu_custom_call.1} parent=5 // pred_check
        %p198 = pneg %p197
      $region22: #{tpu_custom_call.1} parent=5 // pred_check_branch
        %200 = sbr.rel (%p198) target = $region24
      $region23: #{tpu_custom_call.1} parent=5 // pred_region
        // Predicated region
        $region25: #{tpu_custom_call.1} parent=23 // pred_check
          %p201 = pneg %p56
        $region26: #{tpu_custom_call.1} parent=23 // pred_check_branch
          %203 = sbr.rel (%p201) target = $region28
        $region27: #{tpu_custom_call.1} parent=23 // pred_region
          %s204 = sand.u32 %s46, 1
          %s205 = scalar_lea.sflag [#allocation3], %s204
          %s206 = sand.u32 %s46, 1
          %s207 = smul.addr %s206, 8
          %s208 = scalar_lea.vmem [#allocation2], %s207
          %s209 = smul.u32 2, %s30
          %s211 = ssub.s32 128, 128
          %212 = vsyncadd %s205, %s211
          %s213 = smul.addr %s29, 2
          %s214 = sadd.s32 %s209, %s213
          %s215 = smul.addr %s214, 64
          %s216 = scalar_lea.hbm %s0, %s215
          %s218 = sshll.u32 %s208, 4
          %s219 = int_to_ptr.vmem [resolvable:$true] %s218
          %221 = dma.hbm_to_vmem [thread:$0]  %s216, 128, %s219, %s205
        $region28: #{tpu_custom_call.1} parent=23 // pred_fallthru
          _
      $region24: #{tpu_custom_call.1} parent=5 // pred_fallthru
        _
      %p222 = scmp.le.s32.totalorder 1, %s22
      %p223 = scmp.lt.s32.totalorder %s22, 3
      %p224 = pnand %p222, %p223
      %p225 = pneg %p224
      // Predicated region
      $region29: #{tpu_custom_call.1} parent=5 // pred_check
        _
      $region30: #{tpu_custom_call.1} parent=5 // pred_check_branch
        %227 = sbr.rel (%p224) target = $region32
      $region31: #{tpu_custom_call.1} parent=5 // pred_region
        %s228 = ssub.s32 %s22, 1
        %s229 = sand.u32 %s49, 1
        %s230 = scalar_lea.sflag [#allocation3], %s229
        %s231 = sand.u32 %s49, 1
        %s232 = smul.addr %s231, 8
        %s233 = scalar_lea.vmem [#allocation2], %s232
        // Predicated region
        $region33: #{tpu_custom_call.1} parent=31 // pred_check
          %p234 = pneg %p62
        $region34: #{tpu_custom_call.1} parent=31 // pred_check_branch
          %236 = sbr.rel (%p234) target = $region36
        $region35: #{tpu_custom_call.1} parent=31 // pred_region
          %237 = dma.done %s230, 128
        $region36: #{tpu_custom_call.1} parent=31 // pred_fallthru
          _
        // Predicated region
        $region37: #{tpu_custom_call.1} parent=31 // pred_check
          %p238 = pneg %p83
        $region38: #{tpu_custom_call.1} parent=31 // pred_check_branch
          %240 = sbr.rel (%p238) target = $region40
        $region39: #{tpu_custom_call.1} parent=31 // pred_region
          %241 = dma.done [#allocation5], 128
        $region40: #{tpu_custom_call.1} parent=31 // pred_fallthru
          _
        // Predicated region
        $region41: #{tpu_custom_call.1} parent=31 // pred_check
          %p242 = pneg %p104
        $region42: #{tpu_custom_call.1} parent=31 // pred_check_branch
          %244 = sbr.rel (%p242) target = $region44
        $region43: #{tpu_custom_call.1} parent=31 // pred_region
          %245 = dma.done [#allocation8], 16
        $region44: #{tpu_custom_call.1} parent=31 // pred_fallthru
          _
        %246 = sfence
        %s247 = sand.u32 %s49, 1
        %s248 = scalar_lea.sflag [#allocation3], %s247
        %s249 = sand.u32 %s49, 1
        %s250 = smul.addr %s249, 8
        %s251 = scalar_lea.vmem [#allocation2], %s250
        %p252 = pneg %p62
        %p253 = pneg %p59
        %p254 = pneg %p83
        %p255 = pneg %p80
        %p256 = pneg %p104
        %p257 = pneg %p101
        %p258 = pneg %p132
        %p259 = pneg %p129
        %s260 = sand.u32 %s119, 1
        %s261 = scalar_lea.sflag [#allocation4], %s260
        %s262 = sand.u32 %s119, 1
        %s263 = smul.addr %s262, 8
        %s264 = scalar_lea.vmem [#allocation9], %s263
        %p265 = pneg %p160
        %p266 = pneg %p157
        %s267 = sand.u32 %s147, 1
        %s268 = scalar_lea.sflag [#allocation11], %s267
        %s269 = sand.u32 %s147, 1
        %s270 = smul.addr %s269, 8
        %s271 = scalar_lea.vmem [#allocation10], %s270
        %s272 = smul.u32 2, %s32
        %s273 = smul.u32 2, %s32
        %s274 = smul.u32 2, %s32
        %v275 = vld [vmem:[%s233] sm:$0xff]
        %s276 = sld [smem:[#allocation6]]
        %v277 = vstv %s276
        %v278 = vmul.f32 %v277, %v275
        %s279 = sld [smem:[#allocation6 + $0x1]]
        %v280 = vstv %s279
        %v281 = vmul.f32 %v280, %v275
        %v283 = vrot.slane %v281, 5
        %v284 = vrot.slane %v283, 4
        %v286 = vadd.f32 %v278, %v284
        %s287 = sld [smem:[#allocation6 + $0x2]]
        %v288 = vstv %s287
        %v289 = vmul.f32 %v288, %v275
        %v291 = vrot.slane %v289, 6
        %v292 = vrot.slane %v291, 4
        %v294 = vadd.f32 %v286, %v292
        %s295 = sld [smem:[#allocation6 + $0x3]]
        %v296 = vstv %s295
        %v297 = vmul.f32 %v296, %v275
        %v299 = vrot.slane %v297, 7
        %v300 = vrot.slane %v299, 4
        %v302 = vadd.f32 %v294, %v300
        %s303 = sld [smem:[#allocation7]]
        %v304 = vstv %s303
        %v305 = vadd.f32 %v302, %v304
        %v308 = vunpack.c.l.s4 1966171168
        %v309 = vunpack.c.0.s8 %v308
        %v310 = vlaneseq
        %v311 = vshrl.u32 %v310, 7
        %v312 = vsub.s32 %v309, %v311
        %v313 = vrot.slane %v305, %v312
        %v315 = vunpack.c.l.s4 1966171168
        %v316 = vunpack.c.0.s8 %v315
        %v317 = vlaneseq
        %v318 = vshrl.u32 %v317, 7
        %v319 = vsub.s32 %v316, %v318
        %v320 = vrot.slane %v313, %v319
        %v322 = vlaneseq
        %vm323 = vcmp.ge.s32.totalorder %v322, 0
        %vm324 = vcmp.lt.s32.totalorder %v322, 256
        %vm325 = vmand %vm323, %vm324
        %326 = vst.msk [vmem:[%s264] ss:$4 sm:$0x3] %vm325, %v320
        %s327 = sld [smem:[#allocation6 + $0x200]]
        %v328 = vstv %s327
        %v329 = vmul.f32 %v328, %v275
        %s330 = sld [smem:[#allocation6 + $0x201]]
        %v331 = vstv %s330
        %v332 = vmul.f32 %v331, %v275
        %v334 = vrot.slane %v332, 5
        %v335 = vrot.slane %v334, 4
        %v337 = vadd.f32 %v329, %v335
        %s338 = sld [smem:[#allocation6 + $0x202]]
        %v339 = vstv %s338
        %v340 = vmul.f32 %v339, %v275
        %v342 = vrot.slane %v340, 6
        %v343 = vrot.slane %v342, 4
        %v345 = vadd.f32 %v337, %v343
        %s346 = sld [smem:[#allocation6 + $0x203]]
        %v347 = vstv %s346
        %v348 = vmul.f32 %v347, %v275
        %v350 = vrot.slane %v348, 7
        %v351 = vrot.slane %v350, 4
        %v353 = vadd.f32 %v345, %v351
        %s354 = sld [smem:[#allocation7 + $0x4]]
        %v355 = vstv %s354
        %v356 = vadd.f32 %v353, %v355
        %v357 = vmul.f32 %v356, 1.442695
        %v358 = vpow.pop %v357
        %v361 = vunpack.c.l.s4 1966171168
        %v362 = vunpack.c.0.s8 %v361
        %v363 = vlaneseq
        %v364 = vshrl.u32 %v363, 7
        %v365 = vsub.s32 %v362, %v364
        %v366 = vrot.slane %v358, %v365
        %v368 = vunpack.c.l.s4 1966171168
        %v369 = vunpack.c.0.s8 %v368
        %v370 = vlaneseq
        %v371 = vshrl.u32 %v370, 7
        %v372 = vsub.s32 %v369, %v371
        %v373 = vrot.slane %v366, %v372
        %375 = vst.msk [vmem:[%s271] ss:$4 sm:$0x3] %vm325, %v373
        %s376 = sld [smem:[#allocation6 + $0x80]]
        %v377 = vstv %s376
        %v378 = vmul.f32 %v377, %v275
        %s379 = sld [smem:[#allocation6 + $0x81]]
        %v380 = vstv %s379
        %v381 = vmul.f32 %v380, %v275
        %v383 = vrot.slane %v381, 5
        %v384 = vrot.slane %v383, 4
        %v386 = vadd.f32 %v378, %v384
        %s387 = sld [smem:[#allocation6 + $0x82]]
        %v388 = vstv %s387
        %v389 = vmul.f32 %v388, %v275
        %v391 = vrot.slane %v389, 6
        %v392 = vrot.slane %v391, 4
        %v394 = vadd.f32 %v386, %v392
        %s395 = sld [smem:[#allocation6 + $0x83]]
        %v396 = vstv %s395
        %v397 = vmul.f32 %v396, %v275
        %v399 = vrot.slane %v397, 7
        %v400 = vrot.slane %v399, 4
        %v402 = vadd.f32 %v394, %v400
        %s403 = sld [smem:[#allocation7 + $0x1]]
        %v404 = vstv %s403
        %v405 = vadd.f32 %v402, %v404
        %v408 = vunpack.c.l.s4 1966171168
        %v409 = vunpack.c.0.s8 %v408
        %v410 = vlaneseq
        %v411 = vshrl.u32 %v410, 7
        %v412 = vsub.s32 %v409, %v411
        %v413 = vrot.slane %v405, %v412
        %v415 = vunpack.c.l.s4 1966171168
        %v416 = vunpack.c.0.s8 %v415
        %v417 = vlaneseq
        %v418 = vshrl.u32 %v417, 7
        %v419 = vsub.s32 %v416, %v418
        %v420 = vrot.slane %v413, %v419
        %s422 = scalar_lea.vmem %s264, 1 [#allocation9]
        %423 = vst.msk [vmem:[%s422] ss:$4 sm:$0x3] %vm325, %v420
        %s424 = sld [smem:[#allocation6 + $0x280]]
        %v425 = vstv %s424
        %v426 = vmul.f32 %v425, %v275
        %s427 = sld [smem:[#allocation6 + $0x281]]
        %v428 = vstv %s427
        %v429 = vmul.f32 %v428, %v275
        %v431 = vrot.slane %v429, 5
        %v432 = vrot.slane %v431, 4
        %v434 = vadd.f32 %v426, %v432
        %s435 = sld [smem:[#allocation6 + $0x282]]
        %v436 = vstv %s435
        %v437 = vmul.f32 %v436, %v275
        %v439 = vrot.slane %v437, 6
        %v440 = vrot.slane %v439, 4
        %v442 = vadd.f32 %v434, %v440
        %s443 = sld [smem:[#allocation6 + $0x283]]
        %v444 = vstv %s443
        %v445 = vmul.f32 %v444, %v275
        %v447 = vrot.slane %v445, 7
        %v448 = vrot.slane %v447, 4
        %v450 = vadd.f32 %v442, %v448
        %s451 = sld [smem:[#allocation7 + $0x5]]
        %v452 = vstv %s451
        %v453 = vadd.f32 %v450, %v452
        %v454 = vmul.f32 %v453, 1.442695
        %v455 = vpow.pop %v454
        %v458 = vunpack.c.l.s4 1966171168
        %v459 = vunpack.c.0.s8 %v458
        %v460 = vlaneseq
        %v461 = vshrl.u32 %v460, 7
        %v462 = vsub.s32 %v459, %v461
        %v463 = vrot.slane %v455, %v462
        %v465 = vunpack.c.l.s4 1966171168
        %v466 = vunpack.c.0.s8 %v465
        %v467 = vlaneseq
        %v468 = vshrl.u32 %v467, 7
        %v469 = vsub.s32 %v466, %v468
        %v470 = vrot.slane %v463, %v469
        %s472 = scalar_lea.vmem %s271, 1 [#allocation10]
        %473 = vst.msk [vmem:[%s472] ss:$4 sm:$0x3] %vm325, %v470
        %s474 = sld [smem:[#allocation6 + $0x100]]
        %v475 = vstv %s474
        %v476 = vmul.f32 %v475, %v275
        %s477 = sld [smem:[#allocation6 + $0x101]]
        %v478 = vstv %s477
        %v479 = vmul.f32 %v478, %v275
        %v481 = vrot.slane %v479, 5
        %v482 = vrot.slane %v481, 4
        %v484 = vadd.f32 %v476, %v482
        %s485 = sld [smem:[#allocation6 + $0x102]]
        %v486 = vstv %s485
        %v487 = vmul.f32 %v486, %v275
        %v489 = vrot.slane %v487, 6
        %v490 = vrot.slane %v489, 4
        %v492 = vadd.f32 %v484, %v490
        %s493 = sld [smem:[#allocation6 + $0x103]]
        %v494 = vstv %s493
        %v495 = vmul.f32 %v494, %v275
        %v497 = vrot.slane %v495, 7
        %v498 = vrot.slane %v497, 4
        %v500 = vadd.f32 %v492, %v498
        %s501 = sld [smem:[#allocation7 + $0x2]]
        %v502 = vstv %s501
        %v503 = vadd.f32 %v500, %v502
        %v506 = vunpack.c.l.s4 1966171168
        %v507 = vunpack.c.0.s8 %v506
        %v508 = vlaneseq
        %v509 = vshrl.u32 %v508, 7
        %v510 = vsub.s32 %v507, %v509
        %v511 = vrot.slane %v503, %v510
        %v513 = vunpack.c.l.s4 1966171168
        %v514 = vunpack.c.0.s8 %v513
        %v515 = vlaneseq
        %v516 = vshrl.u32 %v515, 7
        %v517 = vsub.s32 %v514, %v516
        %v518 = vrot.slane %v511, %v517
        %s520 = scalar_lea.vmem %s264, 2 [#allocation9]
        %521 = vst.msk [vmem:[%s520] ss:$4 sm:$0x3] %vm325, %v518
        %s522 = sld [smem:[#allocation6 + $0x300]]
        %v523 = vstv %s522
        %v524 = vmul.f32 %v523, %v275
        %s525 = sld [smem:[#allocation6 + $0x301]]
        %v526 = vstv %s525
        %v527 = vmul.f32 %v526, %v275
        %v529 = vrot.slane %v527, 5
        %v530 = vrot.slane %v529, 4
        %v532 = vadd.f32 %v524, %v530
        %s533 = sld [smem:[#allocation6 + $0x302]]
        %v534 = vstv %s533
        %v535 = vmul.f32 %v534, %v275
        %v537 = vrot.slane %v535, 6
        %v538 = vrot.slane %v537, 4
        %v540 = vadd.f32 %v532, %v538
        %s541 = sld [smem:[#allocation6 + $0x303]]
        %v542 = vstv %s541
        %v543 = vmul.f32 %v542, %v275
        %v545 = vrot.slane %v543, 7
        %v546 = vrot.slane %v545, 4
        %v548 = vadd.f32 %v540, %v546
        %s549 = sld [smem:[#allocation7 + $0x6]]
        %v550 = vstv %s549
        %v551 = vadd.f32 %v548, %v550
        %v552 = vmul.f32 %v551, 1.442695
        %v553 = vpow.pop %v552
        %v556 = vunpack.c.l.s4 1966171168
        %v557 = vunpack.c.0.s8 %v556
        %v558 = vlaneseq
        %v559 = vshrl.u32 %v558, 7
        %v560 = vsub.s32 %v557, %v559
        %v561 = vrot.slane %v553, %v560
        %v563 = vunpack.c.l.s4 1966171168
        %v564 = vunpack.c.0.s8 %v563
        %v565 = vlaneseq
        %v566 = vshrl.u32 %v565, 7
        %v567 = vsub.s32 %v564, %v566
        %v568 = vrot.slane %v561, %v567
        %s570 = scalar_lea.vmem %s271, 2 [#allocation10]
        %571 = vst.msk [vmem:[%s570] ss:$4 sm:$0x3] %vm325, %v568
        %s572 = sld [smem:[#allocation6 + $0x180]]
        %v573 = vstv %s572
        %v574 = vmul.f32 %v573, %v275
        %s575 = sld [smem:[#allocation6 + $0x181]]
        %v576 = vstv %s575
        %v577 = vmul.f32 %v576, %v275
        %v579 = vrot.slane %v577, 5
        %v580 = vrot.slane %v579, 4
        %v582 = vadd.f32 %v574, %v580
        %s583 = sld [smem:[#allocation6 + $0x182]]
        %v584 = vstv %s583
        %v585 = vmul.f32 %v584, %v275
        %v587 = vrot.slane %v585, 6
        %v588 = vrot.slane %v587, 4
        %v590 = vadd.f32 %v582, %v588
        %s591 = sld [smem:[#allocation6 + $0x183]]
        %v592 = vstv %s591
        %v593 = vmul.f32 %v592, %v275
        %v595 = vrot.slane %v593, 7
        %v596 = vrot.slane %v595, 4
        %v598 = vadd.f32 %v590, %v596
        %s599 = sld [smem:[#allocation7 + $0x3]]
        %v600 = vstv %s599
        %v601 = vadd.f32 %v598, %v600
        %v604 = vunpack.c.l.s4 1966171168
        %v605 = vunpack.c.0.s8 %v604
        %v606 = vlaneseq
        %v607 = vshrl.u32 %v606, 7
        %v608 = vsub.s32 %v605, %v607
        %v609 = vrot.slane %v601, %v608
        %v611 = vunpack.c.l.s4 1966171168
        %v612 = vunpack.c.0.s8 %v611
        %v613 = vlaneseq
        %v614 = vshrl.u32 %v613, 7
        %v615 = vsub.s32 %v612, %v614
        %v616 = vrot.slane %v609, %v615
        %s618 = scalar_lea.vmem %s264, 3 [#allocation9]
        %619 = vst.msk [vmem:[%s618] ss:$4 sm:$0x3] %vm325, %v616
        %s620 = sld [smem:[#allocation6 + $0x380]]
        %v621 = vstv %s620
        %v622 = vmul.f32 %v621, %v275
        %s623 = sld [smem:[#allocation6 + $0x381]]
        %v624 = vstv %s623
        %v625 = vmul.f32 %v624, %v275
        %v627 = vrot.slane %v625, 5
        %v628 = vrot.slane %v627, 4
        %v630 = vadd.f32 %v622, %v628
        %s631 = sld [smem:[#allocation6 + $0x382]]
        %v632 = vstv %s631
        %v633 = vmul.f32 %v632, %v275
        %v635 = vrot.slane %v633, 6
        %v636 = vrot.slane %v635, 4
        %v638 = vadd.f32 %v630, %v636
        %s639 = sld [smem:[#allocation6 + $0x383]]
        %v640 = vstv %s639
        %v641 = vmul.f32 %v640, %v275
        %v643 = vrot.slane %v641, 7
        %v644 = vrot.slane %v643, 4
        %v646 = vadd.f32 %v638, %v644
        %s647 = sld [smem:[#allocation7 + $0x7]]
        %v648 = vstv %s647
        %v649 = vadd.f32 %v646, %v648
        %v650 = vmul.f32 %v649, 1.442695
        %v651 = vpow.pop %v650
        %v654 = vunpack.c.l.s4 1966171168
        %v655 = vunpack.c.0.s8 %v654
        %v656 = vlaneseq
        %v657 = vshrl.u32 %v656, 7
        %v658 = vsub.s32 %v655, %v657
        %v659 = vrot.slane %v651, %v658
        %v661 = vunpack.c.l.s4 1966171168
        %v662 = vunpack.c.0.s8 %v661
        %v663 = vlaneseq
        %v664 = vshrl.u32 %v663, 7
        %v665 = vsub.s32 %v662, %v664
        %v666 = vrot.slane %v659, %v665
        %s668 = scalar_lea.vmem %s271, 3 [#allocation10]
        %669 = vst.msk [vmem:[%s668] ss:$4 sm:$0x3] %vm325, %v666
        %s670 = sand.u32 %s119, 1
        %s671 = scalar_lea.sflag [#allocation4], %s670
        %s672 = sand.u32 %s119, 1
        %s673 = smul.addr %s672, 8
        %s674 = scalar_lea.vmem [#allocation9], %s673
        %s675 = sand.u32 %s147, 1
        %s676 = scalar_lea.sflag [#allocation11], %s675
        %s677 = sand.u32 %s147, 1
        %s678 = smul.addr %s677, 8
        %s679 = scalar_lea.vmem [#allocation10], %s678
        // Predicated region
        $region45: #{tpu_custom_call.1} parent=31 // pred_check
          %p680 = pneg %p129
        $region46: #{tpu_custom_call.1} parent=31 // pred_check_branch
          %682 = sbr.rel (%p680) target = $region48
        $region47: #{tpu_custom_call.1} parent=31 // pred_region
          %s683 = smul.u32 2, %s32
          %s685 = ssub.s32 128, 128
          %686 = vsyncadd %s671, %s685
          %s687 = smul.addr %s31, 2
          %s688 = sadd.s32 %s683, %s687
          %s689 = smul.addr %s688, 64
          %s690 = scalar_lea.hbm %s3, %s689
          %s692 = sshll.u32 %s674, 4
          %s693 = int_to_ptr.vmem [resolvable:$true] %s692
          %695 = dma.vmem_to_hbm [thread:$0]  %s693, 128, %s690, %s671
        $region48: #{tpu_custom_call.1} parent=31 // pred_fallthru
          _
        // Predicated region
        $region49: #{tpu_custom_call.1} parent=31 // pred_check
          %p696 = pneg %p157
        $region50: #{tpu_custom_call.1} parent=31 // pred_check_branch
          %698 = sbr.rel (%p696) target = $region52
        $region51: #{tpu_custom_call.1} parent=31 // pred_region
          %s699 = smul.u32 2, %s32
          %s701 = ssub.s32 128, 128
          %702 = vsyncadd %s676, %s701
          %s703 = smul.addr %s31, 2
          %s704 = sadd.s32 %s699, %s703
          %s705 = smul.addr %s704, 64
          %s706 = scalar_lea.hbm %s4, %s705
          %s708 = sshll.u32 %s679, 4
          %s709 = int_to_ptr.vmem [resolvable:$true] %s708
          %711 = dma.vmem_to_hbm [thread:$0]  %s709, 128, %s706, %s676
        $region52: #{tpu_custom_call.1} parent=31 // pred_fallthru
          _
      $region32: #{tpu_custom_call.1} parent=5 // pred_fallthru
        _
      %p712 = scmp.le.s32.totalorder 2, %s22
      // Predicated region
      $region53: #{tpu_custom_call.1} parent=5 // pred_check
        %p713 = pneg %p712
      $region54: #{tpu_custom_call.1} parent=5 // pred_check_branch
        %715 = sbr.rel (%p713) target = $region56
      $region55: #{tpu_custom_call.1} parent=5 // pred_region
        %s716 = ssub.s32 %s22, 2
        // Predicated region
        $region57: #{tpu_custom_call.1} parent=55 // pred_check
          %p717 = pneg %p135
        $region58: #{tpu_custom_call.1} parent=55 // pred_check_branch
          %719 = sbr.rel (%p717) target = $region60
        $region59: #{tpu_custom_call.1} parent=55 // pred_region
          %s720 = sand.u32 %s120, 1
          %s721 = scalar_lea.sflag [#allocation4], %s720
          %s722 = sand.u32 %s120, 1
          %s723 = smul.addr %s722, 8
          %s724 = scalar_lea.vmem [#allocation9], %s723
          %725 = dma.done %s721, 128
        $region60: #{tpu_custom_call.1} parent=55 // pred_fallthru
          _
        // Predicated region
        $region61: #{tpu_custom_call.1} parent=55 // pred_check
          %p726 = pneg %p163
        $region62: #{tpu_custom_call.1} parent=55 // pred_check_branch
          %728 = sbr.rel (%p726) target = $region64
        $region63: #{tpu_custom_call.1} parent=55 // pred_region
          %s729 = sand.u32 %s148, 1
          %s730 = scalar_lea.sflag [#allocation11], %s729
          %s731 = sand.u32 %s148, 1
          %s732 = smul.addr %s731, 8
          %s733 = scalar_lea.vmem [#allocation10], %s732
          %734 = dma.done %s730, 128
        $region64: #{tpu_custom_call.1} parent=55 // pred_fallthru
          _
      $region56: #{tpu_custom_call.1} parent=5 // pred_fallthru
        _
    $region6: #{tpu_custom_call.1} parent=1 // loop_footer
      %s26 = sadd.s32 1, %s22
    $region7: #{tpu_custom_call.1} parent=1 // loop_footer_branch
      %21 = sbr.rel target = $region3
    $region8: #{tpu_custom_call.1} parent=1 // loop_exit
      _
    %735 = vsyncpa [#allocation3], 1
    %s736 = scalar_lea.sflag [#allocation3], 1
    %737 = vsyncpa %s736, 1
    %738 = vsyncpa [#allocation4], 1
    %s739 = scalar_lea.sflag [#allocation4], 1
    %740 = vsyncpa %s739, 1
    %741 = vsyncpa [#allocation11], 1
    %s742 = scalar_lea.sflag [#allocation11], 1
    %743 = vsyncpa %s742, 1
    %744 = vsyncpa [#allocation5], 1
    %s745 = scalar_lea.sflag [#allocation5], 1
    %746 = vsyncpa %s745, 1
    %747 = vsyncpa [#allocation8], 1

</llo_original>
